<compile_context>
chip_gen: v6e
topology: v6e:2x2x1
jax: 0.10.0
libtpu: 0.0.40
codegen_flags: <defaults>
</compile_context>

<pallas_src>
import functools

import jax
import jax.numpy as jnp
from jax import lax
from jax.experimental import pallas as pl
from jax.experimental.pallas import tpu as pltpu

NUM_SQUARINGS = 15          # (lam2/lam1)^(2^15): dominant-eigenvalue error negligible
RENORM_EVERY = 3            # ||C||_F = 1 => lam_max(C) >= 1/sqrt(s); 3 grouped
                            # squarings keep C >= s**-4, far from f32 underflow.
TILE_BYTES = 2 * 1024 * 1024    # per-input-tile VMEM budget (f32, lane-padded):
                                # 2 inputs x 2 pipeline buffers ~ 8 MiB -> safe on
                                # v5e (16 MiB scoped), v6e (32 MiB), v7x (64 MiB phys).
VMEM_LIMIT = 32 * 1024 * 1024


def _gram_kernel(contract_axis, tile, extent, need_mask,
                 pred_ref, target_ref, gram_ref):
    """Accumulate one partial Gram matrix of diff = pred - target."""
    c = pl.program_id(0)            # core / parallel split
    i = pl.program_id(1)            # tile index along the contracted (long) axis
    k = pl.num_programs(1)

    @pl.when(i == 0)
    def _init():
        gram_ref[...] = jnp.zeros_like(gram_ref)

    # Widen on the VMEM tile (inputs stay in their HBM dtype -> half DMA bytes
    # for bf16/f16 inputs).
    a = pred_ref[...].astype(jnp.float32) - target_ref[...].astype(jnp.float32)

    if need_mask:
        # Zero rows/cols past the true extent: the partial last tile and the
        # clamped "ghost" tiles of an uneven per-core split contribute nothing.
        start = (c * k + i) * tile
        idx = lax.broadcasted_iota(jnp.int32, a.shape, contract_axis)
        a = jnp.where(idx + start < extent, a, 0.0)

    # Contract over the long axis on the MXU without materializing a transpose:
    #   tall (m >= n): sum_r a[r, :]^T a[r, :]  -> (n, n)
    #   wide (m <  n): sum_c a[:, c] a[:, c]^T  -> (m, m)
    gram_ref[...] += lax.dot_general(
        a, a,
        dimension_numbers=(((contract_axis,), (contract_axis,)), ((), ())),
        preferred_element_type=jnp.float32,
    )


def _finalize_kernel(partials_ref, out_ref):
    """sqrt(lambda_max(sum of partial Grams)) via repeated squaring."""
    b = jnp.sum(partials_ref[...], axis=0)                 # (s, s), symmetric PSD

    # Repeated squaring preserves eigenvectors; C converges to (a scaled)
    # projector onto the dominant eigen-subspace.  Renormalizing only every
    # RENORM_EVERY squarings cuts the serial MXU->XLU->EUP tail ~3x while
    # staying well inside f32 range (lambda_max(C) >= s**-4 between renorms).
    c = b * lax.rsqrt(jnp.sum(b * b) + 1e-30)
    for j in range(NUM_SQUARINGS):
        c = jnp.dot(c, c, preferred_element_type=jnp.float32)
        if (j + 1) % RENORM_EVERY == 0:
            c = c * lax.rsqrt(jnp.sum(c * c) + 1e-30)

    # lambda_max(B) ~= trace(B C) / trace(C)  (scale-invariant in C).
    s = b.shape[0]
    row = lax.broadcasted_iota(jnp.int32, (s, s), 0)
    col = lax.broadcasted_iota(jnp.int32, (s, s), 1)
    eye = (row == col).astype(jnp.float32)
    num = jnp.sum(b * c, keepdims=True)                    # (1, 1)
    den = jnp.sum(c * eye, keepdims=True)                  # (1, 1)
    out_ref[...] = jnp.sqrt(jnp.maximum(num / (den + 1e-30), 0.0))


def spectral_norm_error(pred, target, *, max_tile=None):
    """Largest singular value of (pred - target); matches torch.svd(diff).S.max()."""
    assert pred.shape == target.shape, "Prediction and target must have the same shape"
    assert pred.ndim == 2, "expected a 2-D matrix"
    # TODO(synk): batched (>2-D) inputs need a per-matrix vmap/loop.

    m, n = pred.shape
    tall = m >= n                       # Gram of the shorter side, no wrapper transpose
    s = n if tall else m                # Gram matrix is (s, s), s = min(m, n)
    extent = m if tall else n           # length of the contracted (long) axis
    itemsize = 4                        # budget against the f32-widened worst case

    # Tile the contracted axis by VMEM budget (not power-of-two divisibility).
    if tall:
        lane = max(-(-n // 128) * 128, 128)                # lane-padded columns
        budget = max(8, (TILE_BYTES // (lane * itemsize)) // 8 * 8)
        if max_tile is not None:
            budget = max(8, min(budget, max_tile // 8 * 8))
        tile = extent if extent <= budget else budget
        block = (tile, n)
    else:
        sub = -(-m // 8) * 8                               # sublane-padded rows
        budget = max(128, (TILE_BYTES // (sub * itemsize)) // 128 * 128)
        if max_tile is not None:
            budget = max(128, min(budget, max_tile // 128 * 128))
        tile = extent if extent <= budget else budget
        block = (m, tile)

    num_tiles = -(-extent // tile)
    ncores = 2 if num_tiles >= 2 else 1     # split partial Grams across v7x's 2 TCs
    k = -(-num_tiles // ncores)             # tiles per core
    ghosts = ncores * k != num_tiles        # duplicated (clamped) tiles, masked to 0
    need_mask = ghosts or (num_tiles * tile != extent)
    last = num_tiles - 1

    if tall:
        if ghosts:
            in_map = lambda c, i: (jnp.minimum(c * k + i, last), 0)
        else:
            in_map = lambda c, i: (c * k + i, 0)
    else:
        if ghosts:
            in_map = lambda c, i: (0, jnp.minimum(c * k + i, last))
        else:
            in_map = lambda c, i: (0, c * k + i)

    gram_kernel = functools.partial(
        _gram_kernel, 0 if tall else 1, tile, extent, need_mask)

    partial_grams = pl.pallas_call(
        gram_kernel,
        out_shape=jax.ShapeDtypeStruct((ncores, s, s), jnp.float32),
        grid_spec=pltpu.PrefetchScalarGridSpec(
            num_scalar_prefetch=0,
            grid=(ncores, k),
            in_specs=[pl.BlockSpec(block, in_map),
                      pl.BlockSpec(block, in_map)],
            out_specs=pl.BlockSpec((None, s, s), lambda c, i: (c, 0, 0)),
        ),
        compiler_params=pltpu.CompilerParams(
            dimension_semantics=("parallel", "arbitrary"),
            vmem_limit_bytes=VMEM_LIMIT,
        ),
        cost_estimate=pl.CostEstimate(
            flops=2 * m * n * s,
            transcendentals=0,
            bytes_accessed=m * n * (pred.dtype.itemsize + target.dtype.itemsize)
            + ncores * s * s * 4,
        ),
    )(pred, target)

    # TODO(synk): for nearly-square inputs with min(m, n) in the many thousands
    # the dense (s, s) Gram stops fitting VMEM; that regime needs a blocked solver.
    out = pl.pallas_call(
        _finalize_kernel,
        out_shape=jax.ShapeDtypeStruct((1, 1), jnp.float32),
        cost_estimate=pl.CostEstimate(
            flops=2 * NUM_SQUARINGS * s ** 3,
            transcendentals=NUM_SQUARINGS // RENORM_EVERY + 2,
            bytes_accessed=ncores * s * s * 4 + 4,
        ),
    )(partial_grams)
    return out[0, 0]


if __name__ == "__main__":
    key = jax.random.PRNGKey(0)
    k1, k2, k3, k4, k5, k6 = jax.random.split(key, 6)

    # Tall input (single tile, single-core path).
    pred = jax.random.normal(k1, (64, 32), dtype=jnp.float32)
    target = jax.random.normal(k2, (64, 32), dtype=jnp.float32)
    got = jax.block_until_ready(spectral_norm_error(pred, target))
    ref = jnp.linalg.svd(pred - target, compute_uv=False).max()
    assert jnp.allclose(got, ref, rtol=1e-3, atol=1e-3), (got, ref)

    # Wide input (Gram of the short side, no wrapper transpose).
    pred_w = jax.random.normal(k3, (16, 48), dtype=jnp.float32)
    target_w = jax.random.normal(k4, (16, 48), dtype=jnp.float32)
    got_w = jax.block_until_ready(spectral_norm_error(pred_w, target_w))
    ref_w = jnp.linalg.svd(pred_w - target_w, compute_uv=False).max()
    assert jnp.allclose(got_w, ref_w, rtol=1e-3, atol=1e-3), (got_w, ref_w)

    # Non-divisible tall input with a forced small tile: exercises the masked
    # partial/ghost tiles and the two-core partial-Gram split (grid = (2, 3)).
    pred_m = jax.random.normal(k5, (72, 32), dtype=jnp.float32)
    target_m = jax.random.normal(k6, (72, 32), dtype=jnp.float32)
    got_m = jax.block_until_ready(spectral_norm_error(pred_m, target_m, max_tile=16))
    ref_m = jnp.linalg.svd(pred_m - target_m, compute_uv=False).max()
    assert jnp.allclose(got_m, ref_m, rtol=1e-3, atol=1e-3), (got_m, ref_m)

    print("KERNEL_OK")
</pallas_src>

<mosaic_0001>
module attributes {stable_mosaic.version = 11 : i64} {
  func.func @_gram_kernel(%arg0: i32, %arg1: i32, %arg2: memref<64x32xf32, #tpu.memory_space<vmem>>, %arg3: memref<64x32xf32, #tpu.memory_space<vmem>>, %arg4: memref<1x32x32xf32, #tpu.memory_space<vmem>>) attributes {dimension_semantics = [#tpu.dimension_semantics<parallel>, #tpu.dimension_semantics<arbitrary>], iteration_bounds = array<i64: 1, 1>, scalar_prefetch = 0 : i64, scratch_operands = 0 : i64, tpu.core_type = #tpu.core_type<tc>, window_params = [{transform_indices = @transform_0, window_bounds = array<i64: 64, 32>}, {transform_indices = @transform_1, window_bounds = array<i64: 64, 32>}, {transform_indices = @transform_2, window_bounds = array<i64: 1, 32, 32>}]} {
    %c0_i32 = arith.constant 0 : i32
    %0 = arith.cmpi eq, %arg1, %c0_i32 : i32
    %1 = arith.extui %0 : i1 to i32
    %c0_i32_0 = arith.constant 0 : i32
    %2 = arith.cmpi ne, %1, %c0_i32_0 : i32
    scf.if %2 {
      %cst_10 = arith.constant 0.000000e+00 : f32
      %13 = vector.broadcast %cst_10 : f32 to vector<32x32xf32>
      %c0_11 = arith.constant 0 : index
      %c0_12 = arith.constant 0 : index
      %c0_13 = arith.constant 0 : index
      %14 = vector.load %arg4[%c0_11, %c0_12, %c0_13] : memref<1x32x32xf32, #tpu.memory_space<vmem>>, vector<1x32x32xf32>
      %15 = vector.shape_cast %14 : vector<1x32x32xf32> to vector<32x32xf32>
      %16 = vector.shape_cast %13 : vector<32x32xf32> to vector<1x32x32xf32>
      tpu.vector_store %arg4[%c0_11, %c0_12, %c0_13], %16 {strides = array<i32>} : memref<1x32x32xf32, #tpu.memory_space<vmem>>, vector<1x32x32xf32>,
    } else {
    }
    %c0 = arith.constant 0 : index
    %c0_1 = arith.constant 0 : index
    %3 = vector.load %arg2[%c0, %c0_1] : memref<64x32xf32, #tpu.memory_space<vmem>>, vector<64x32xf32>
    %c0_2 = arith.constant 0 : index
    %c0_3 = arith.constant 0 : index
    %4 = vector.load %arg3[%c0_2, %c0_3] : memref<64x32xf32, #tpu.memory_space<vmem>>, vector<64x32xf32>
    %5 = arith.subf %3, %4 : vector<64x32xf32>
    %c0_4 = arith.constant 0 : index
    %c0_5 = arith.constant 0 : index
    %c0_6 = arith.constant 0 : index
    %6 = vector.load %arg4[%c0_4, %c0_5, %c0_6] : memref<1x32x32xf32, #tpu.memory_space<vmem>>, vector<1x32x32xf32>
    %7 = vector.shape_cast %6 : vector<1x32x32xf32> to vector<32x32xf32>
    %cst = arith.constant dense<0.000000e+00> : vector<32x32xf32>
    %8 = tpu.matmul %5, %5, %cst {dimension_numbers = #tpu.dot_dimension_numbers<[0], [0], [1], [1], [0, 1, 1, 1], [], []>} : vector<64x32xf32>, vector<64x32xf32>, vector<32x32xf32> -> vector<32x32xf32>
    %9 = arith.addf %7, %8 : vector<32x32xf32>
    %c0_7 = arith.constant 0 : index
    %c0_8 = arith.constant 0 : index
    %c0_9 = arith.constant 0 : index
    %10 = vector.load %arg4[%c0_7, %c0_8, %c0_9] : memref<1x32x32xf32, #tpu.memory_space<vmem>>, vector<1x32x32xf32>
    %11 = vector.shape_cast %10 : vector<1x32x32xf32> to vector<32x32xf32>
    %12 = vector.shape_cast %9 : vector<32x32xf32> to vector<1x32x32xf32>
    tpu.vector_store %arg4[%c0_7, %c0_8, %c0_9], %12 {strides = array<i32>} : memref<1x32x32xf32, #tpu.memory_space<vmem>>, vector<1x32x32xf32>,
    return
  }
  func.func @transform_0(%arg0: i32, %arg1: i32) -> (i32, i32) {
    %c1_i32 = arith.constant 1 : i32
    %0 = arith.muli %arg0, %c1_i32 : i32
    %1 = arith.addi %0, %arg1 : i32
    %c0_i32 = arith.constant 0 : i32
    %c0_i32_0 = arith.constant 0 : i32
    return %1, %c0_i32 : i32, i32
  }
  func.func @transform_1(%arg0: i32, %arg1: i32) -> (i32, i32) {
    %c1_i32 = arith.constant 1 : i32
    %0 = arith.muli %arg0, %c1_i32 : i32
    %1 = arith.addi %0, %arg1 : i32
    %c0_i32 = arith.constant 0 : i32
    %c0_i32_0 = arith.constant 0 : i32
    return %1, %c0_i32 : i32, i32
  }
  func.func @transform_2(%arg0: i32, %arg1: i32) -> (i32, i32, i32) {
    %c0_i32 = arith.constant 0 : i32
    %c0_i32_0 = arith.constant 0 : i32
    %c0_i32_1 = arith.constant 0 : i32
    return %arg0, %c0_i32, %c0_i32_0 : i32, i32, i32
  }
}

</mosaic_0001>

<llo_original>
// kernel: tpu_custom_call.1
$region0: #{tpu_custom_call.1}
  #allocation0 [shape = 'u32[]', space=smem, size = 0x4, offset = 0x4, fixed_abs, tag = 'smem constant byte address 0x4 - core index']
  #allocation1 [shape = 'u32[144,128]{1,0:T(1,128)}', space=vmem, size = 0x12000, scoped, tag = 'internal scratch']
  %s0 = inlined_call_operand.vmem [shape: f32[64,32], index: 0, kind: input, shape index: {}]
  %s1 = inlined_call_operand.vmem [shape: f32[64,32], index: 1, kind: input, shape index: {}]
  %s2 = inlined_call_operand.hbm [shape: f32[1,32,32], index: 2, kind: output, shape index: {}]
  %s3 = sld [smem:[#allocation0]]
  $region22: #{tpu_custom_call.1} parent=0
    _
  %s5 = ssub.s32 1, %s3
  %s6 = scalar_select 0, %s5, %s3
  $region1: #{tpu_custom_call.1} parent=0
    #allocation2 [shape = 'u8[16384]{0}', space=vmem, size = 0x4000, scoped, tag = 'output window, operand 0, single buffered']
    #allocation3 [shape = 's32[1]{0}', space=sflag, size = 0x4, scoped, tag = 'scoped memory for tpu_custom_call.1']
    %7 = vsyncpa [#allocation3], 0
    // Predicated region
    $region2: #{tpu_custom_call.1} parent=1 // pred_check
      _
    $region3: #{tpu_custom_call.1} parent=1 // pred_check_branch
      %9 = sbr.rel (0) target = $region5
    $region4: #{tpu_custom_call.1} parent=1 // pred_region
      %s10 = sadd.s32 0, 0
      %s11 = smul.u32 8, %s10
      %p12 = scmp.lt.s32.totalorder %s11, 7
      %s13 = scalar_select %p12, %s11, 7
      %s14 = smul.addr %s13, 8
      %s15 = scalar_lea.vmem %s0, %s14
      %s16 = sadd.s32 0, 0
      %s17 = smul.u32 8, %s16
    $region5: #{tpu_custom_call.1} parent=1 // pred_fallthru
      _
    // Predicated region
    $region6: #{tpu_custom_call.1} parent=1 // pred_check
      _
    $region7: #{tpu_custom_call.1} parent=1 // pred_check_branch
      %19 = sbr.rel (0) target = $region9
    $region8: #{tpu_custom_call.1} parent=1 // pred_region
      %s20 = sadd.s32 0, 0
      %s21 = smul.u32 8, %s20
      %p22 = scmp.lt.s32.totalorder %s21, 7
      %s23 = scalar_select %p22, %s21, 7
      %s24 = smul.addr %s23, 8
      %s25 = scalar_lea.vmem %s1, %s24
      %s26 = sadd.s32 0, 0
      %s27 = smul.u32 8, %s26
    $region9: #{tpu_custom_call.1} parent=1 // pred_fallthru
      _
    %s28 = sadd.s32 0, 0
    %s29 = smul.u32 8, %s28
    %p30 = scmp.lt.s32.totalorder %s29, 7
    %s31 = scalar_select %p30, %s29, 7
    %s32 = smul.addr %s31, 8
    %s33 = scalar_lea.vmem %s0, %s32
    %s34 = sadd.s32 0, 0
    %s35 = smul.u32 8, %s34
    %p36 = scmp.lt.s32.totalorder %s35, 7
    %s37 = scalar_select %p36, %s35, 7
    %s38 = smul.addr %s37, 8
    %s39 = scalar_lea.vmem %s1, %s38
    %s40 = sadd.s32 0, 0
    %s41 = smul.u32 8, %s40
    %p42 = scmp.lt.s32.totalorder %s41, 7
    %s43 = scalar_select %p42, %s41, 7
    %s44 = smul.addr %s43, 8
    %s45 = scalar_lea.vmem %s0, %s44
    %s46 = sadd.s32 0, 0
    %s47 = smul.u32 8, %s46
    %s48 = sadd.s32 0, 0
    %s49 = smul.u32 8, %s48
    %p50 = scmp.lt.s32.totalorder %s49, 7
    %s51 = scalar_select %p50, %s49, 7
    %s52 = smul.addr %s51, 8
    %s53 = scalar_lea.vmem %s1, %s52
    %s54 = sadd.s32 0, 0
    %s55 = smul.u32 8, %s54
    %p56 = scmp.eq.s32.totalorder 0, 0
    // Predicated region
    $region10: #{tpu_custom_call.1} parent=1 // pred_check
      %p57 = pneg %p56
    $region11: #{tpu_custom_call.1} parent=1 // pred_check_branch
      %59 = sbr.rel (%p57) target = $region13
    $region12: #{tpu_custom_call.1} parent=1 // pred_region
      %vm60 = vcmask 261120
      %61 = vst.msk [vmem:[#allocation2] sm:$0xff] %vm60, 0.0
      %62 = vst.msk [vmem:[#allocation2 + $0x8] sm:$0xff] %vm60, 0.0
      %63 = vst.msk [vmem:[#allocation2 + $0x10] sm:$0xff] %vm60, 0.0
      %64 = vst.msk [vmem:[#allocation2 + $0x18] sm:$0xff] %vm60, 0.0
    $region13: #{tpu_custom_call.1} parent=1 // pred_fallthru
      _
    %v65 = vld [vmem:[%s45] sm:$0xff]
    %v66 = vld [vmem:[%s45 + $0x8] sm:$0xff]
    %v67 = vld [vmem:[%s45 + $0x10] sm:$0xff]
    %v68 = vld [vmem:[%s45 + $0x18] sm:$0xff]
    %v69 = vld [vmem:[%s45 + $0x20] sm:$0xff]
    %v70 = vld [vmem:[%s45 + $0x28] sm:$0xff]
    %v71 = vld [vmem:[%s45 + $0x30] sm:$0xff]
    %v72 = vld [vmem:[%s45 + $0x38] sm:$0xff]
    %v73 = vld [vmem:[%s53] sm:$0xff]
    %v74 = vld [vmem:[%s53 + $0x8] sm:$0xff]
    %v75 = vld [vmem:[%s53 + $0x10] sm:$0xff]
    %v76 = vld [vmem:[%s53 + $0x18] sm:$0xff]
    %v77 = vld [vmem:[%s53 + $0x20] sm:$0xff]
    %v78 = vld [vmem:[%s53 + $0x28] sm:$0xff]
    %v79 = vld [vmem:[%s53 + $0x30] sm:$0xff]
    %v80 = vld [vmem:[%s53 + $0x38] sm:$0xff]
    %v81 = vsub.f32 %v65, %v73
    %v82 = vsub.f32 %v66, %v74
    %v83 = vsub.f32 %v67, %v75
    %v84 = vsub.f32 %v68, %v76
    %v85 = vsub.f32 %v69, %v77
    %v86 = vsub.f32 %v70, %v78
    %v87 = vsub.f32 %v71, %v79
    %v88 = vsub.f32 %v72, %v80
    %v89 = vld [vmem:[#allocation2] sm:$0xff]
    %v90 = vld [vmem:[#allocation2 + $0x8] sm:$0xff]
    %v91 = vld [vmem:[#allocation2 + $0x10] sm:$0xff]
    %v92 = vld [vmem:[#allocation2 + $0x18] sm:$0xff]
    %93 = vxpose.xlu0.b32.start [1/16] %v81, 128
    %94 = vxpose.xlu0.b32.cont [2/16] %v82, 128
    %95 = vxpose.xlu0.b32.cont [3/16] %v83, 128
    %96 = vxpose.xlu0.b32.cont [4/16] %v84, 128
    %97 = vxpose.xlu0.b32.cont [5/16] %v85, 128
    %98 = vxpose.xlu0.b32.cont [6/16] %v86, 128
    %99 = vxpose.xlu0.b32.cont [7/16] %v87, 128
    %100 = vxpose.xlu0.b32.cont [8/16] %v88, 128
    %101 = vxpose.xlu0.b32.cont [9/16] 0.0, 128
    %102 = vxpose.xlu0.b32.cont [10/16] 0.0, 128
    %103 = vxpose.xlu0.b32.cont [11/16] 0.0, 128
    %104 = vxpose.xlu0.b32.cont [12/16] 0.0, 128
    %105 = vxpose.xlu0.b32.cont [13/16] 0.0, 128
    %106 = vxpose.xlu0.b32.cont [14/16] 0.0, 128
    %107 = vxpose.xlu0.b32.cont [15/16] 0.0, 128
    %108 = vxpose.xlu0.b32.end [16/16] 0.0, 128
    %v109 = vpop.trf.xlu0
    %v110 = vpop.trf.xlu0
    %v111 = vpop.trf.xlu0
    %v112 = vpop.trf.xlu0
    %v113 = vpop.trf.xlu0
    %v114 = vpop.trf.xlu0
    %v115 = vpop.trf.xlu0
    %v116 = vpop.trf.xlu0
    %v117 = vpop.trf.xlu0
    %v118 = vpop.trf.xlu0
    %v119 = vpop.trf.xlu0
    %v120 = vpop.trf.xlu0
    %v121 = vpop.trf.xlu0
    %v122 = vpop.trf.xlu0
    %v123 = vpop.trf.xlu0
    %v124 = vpop.trf.xlu0
    %vm125 = vcmask 523264
    %v127 = vsel %vm125, %v109, 0
    %v130 = vsel %vm125, %v110, 0
    %v133 = vsel %vm125, %v111, 0
    %v136 = vsel %vm125, %v112, 0
    %138 = vmatprep.subr.mxu0 0.0
    %139 = vmatpush1.msra.mxu0 0.0
    %140 = vmatprep.subr.mxu0 0.0
    %141 = vmatpush1.msra.mxu0 0.0
    %142 = vmatprep.subr.mxu0 0.0
    %143 = vmatpush1.msra.mxu0 0.0
    %144 = vmatprep.subr.mxu0 0.0
    %145 = vmatpush1.msra.mxu0 0.0
    %146 = vmatprep.subr.mxu0 0.0
    %147 = vmatpush1.msra.mxu0 0.0
    %148 = vmatprep.subr.mxu0 0.0
    %149 = vmatpush1.msra.mxu0 0.0
    %150 = vmatprep.subr.mxu0 0.0
    %151 = vmatpush1.msra.mxu0 0.0
    %152 = vmatprep.subr.mxu0 0.0
    %153 = vmatpush1.msra.mxu0 0.0
    %154 = vmatprep.subr.mxu0 0.0
    %155 = vmatpush1.msra.mxu0 %v88
    %156 = vmatprep.subr.mxu0 0.0
    %157 = vmatpush1.msra.mxu0 %v87
    %158 = vmatprep.subr.mxu0 0.0
    %159 = vmatpush1.msra.mxu0 %v86
    %160 = vmatprep.subr.mxu0 0.0
    %161 = vmatpush1.msra.mxu0 %v85
    %162 = vmatprep.subr.mxu0 0.0
    %163 = vmatpush1.msra.mxu0 %v84
    %164 = vmatprep.subr.mxu0 0.0
    %165 = vmatpush1.msra.mxu0 %v83
    %166 = vmatprep.subr.mxu0 0.0
    %167 = vmatpush1.msra.mxu0 %v82
    %168 = vmatprep.subr.mxu0 0.0
    %169 = vmatpush1.msra.mxu0 %v81
    %170 = vmatprep.subr.mxu0 0.0
    %171 = vmatpush2.msra.mxu0 0.0
    %172 = vmatprep.subr.mxu0 0.0
    %173 = vmatpush2.msra.mxu0 0.0
    %174 = vmatprep.subr.mxu0 0.0
    %175 = vmatpush2.msra.mxu0 0.0
    %176 = vmatprep.subr.mxu0 0.0
    %177 = vmatpush2.msra.mxu0 0.0
    %178 = vmatprep.subr.mxu0 0.0
    %179 = vmatpush2.msra.mxu0 0.0
    %180 = vmatprep.subr.mxu0 0.0
    %181 = vmatpush2.msra.mxu0 0.0
    %182 = vmatprep.subr.mxu0 0.0
    %183 = vmatpush2.msra.mxu0 0.0
    %184 = vmatprep.subr.mxu0 0.0
    %185 = vmatpush2.msra.mxu0 0.0
    %186 = vmatprep.subr.mxu0 0.0
    %187 = vmatpush2.msra.mxu0 0.0
    %188 = vmatprep.subr.mxu0 0.0
    %189 = vmatpush2.msra.mxu0 0.0
    %190 = vmatprep.subr.mxu0 0.0
    %191 = vmatpush2.msra.mxu0 0.0
    %192 = vmatprep.subr.mxu0 0.0
    %193 = vmatpush2.msra.mxu0 0.0
    %194 = vmatprep.subr.mxu0 0.0
    %195 = vmatpush2.msra.mxu0 0.0
    %196 = vmatprep.subr.mxu0 0.0
    %197 = vmatpush2.msra.mxu0 0.0
    %198 = vmatprep.subr.mxu0 0.0
    %199 = vmatpush2.msra.mxu0 0.0
    %200 = vmatprep.subr.mxu0 0.0
    %201 = vmatpush2.msra.mxu0 0.0
    %202 = vmatprep.mubr.f32.mxu0 0.0
    %203 = vmatmul.mubr.f32.gmra.mxu0 %v127
    %v204 = vpop.f32.mrf.mxu0
    %v205 = vadd.f32 0.0, %v204
    %v206 = vpop.f32.mrf.mxu0
    %207 = vmatprep.mubr.f32.mxu0 0.0
    %208 = vmatmul.mubr.f32.gmra.mxu0 %v130
    %v209 = vpop.f32.mrf.mxu0
    %v210 = vadd.f32 0.0, %v209
    %v211 = vpop.f32.mrf.mxu0
    %212 = vmatprep.mubr.f32.mxu0 0.0
    %213 = vmatmul.mubr.f32.gmra.mxu0 %v133
    %v214 = vpop.f32.mrf.mxu0
    %v215 = vadd.f32 0.0, %v214
    %v216 = vpop.f32.mrf.mxu0
    %217 = vmatprep.mubr.f32.mxu0 0.0
    %218 = vmatmul.mubr.f32.gmra.mxu0 %v136
    %v219 = vpop.f32.mrf.mxu0
    %v220 = vadd.f32 0.0, %v219
    %v221 = vpop.f32.mrf.mxu0
    %222 = vdwg.mxu0
    %v223 = vadd.f32 %v89, %v205
    %v224 = vadd.f32 %v90, %v210
    %v225 = vadd.f32 %v91, %v215
    %v226 = vadd.f32 %v92, %v220
    %vm227 = vcmask 261120
    %228 = vst.msk [vmem:[#allocation2] sm:$0xff] %vm227, %v223
    %229 = vst.msk [vmem:[#allocation2 + $0x8] sm:$0xff] %vm227, %v224
    %230 = vst.msk [vmem:[#allocation2 + $0x10] sm:$0xff] %vm227, %v225
    %231 = vst.msk [vmem:[#allocation2 + $0x18] sm:$0xff] %vm227, %v226
    // Predicated region
    $region14: #{tpu_custom_call.1} parent=1 // pred_check
      _
    $region15: #{tpu_custom_call.1} parent=1 // pred_check_branch
      %233 = sbr.rel (0) target = $region17
    $region16: #{tpu_custom_call.1} parent=1 // pred_region
      %s235 = ssub.s32 512, 512
      %236 = vsyncadd [#allocation3], %s235
      %s237 = sshll.u32 [#allocation2], 4
      %s238 = int_to_ptr.vmem [resolvable:$true] %s237
      %243 = dma.vmem_to_hbm [thread:$0]  %s238, 512, %s2, [#allocation3], 128, 128, 8
    $region17: #{tpu_custom_call.1} parent=1 // pred_fallthru
      _
    // Predicated region
    $region18: #{tpu_custom_call.1} parent=1 // pred_check
      _
    $region19: #{tpu_custom_call.1} parent=1 // pred_check_branch
      %245 = sbr.rel (0) target = $region21
    $region20: #{tpu_custom_call.1} parent=1 // pred_region
      %246 = dma.done [#allocation3], 512
    $region21: #{tpu_custom_call.1} parent=1 // pred_fallthru
      _
    %247 = vsyncpa [#allocation3], 1

</llo_original>
